<compile_context>
chip_gen: v5e
topology: v5e:2x2
jax: 0.10.0
libtpu: 0.0.40
codegen_flags: <defaults>
</compile_context>

<pallas_src>
import numpy as np
import jax
import jax.numpy as jnp
from jax.experimental import pallas as pl
from jax.experimental.pallas import tpu as pltpu

_LANE = 128     # vreg lane width
_SUBLANE = 8    # vreg sublane count


def _round_up(a: int, b: int) -> int:
    return (a + b - 1) // b * b


def _logreg_kernel(x_ref, w_ref, b_ref, o_ref):
    # x_ref: (tile_rows, D)     VMEM batch tile (double-buffered over the grid)
    # w_ref: (1, D)             VMEM, resident across all grid steps
    # b_ref: (1, 1)             SMEM scalar bias
    # o_ref: (1, 1, tile_rows)  VMEM lane-dense output slab
    #
    # Contract D on the MXU: (1, D) x (tile_rows, D)^T -> (1, tile_rows).
    # Transposed-rhs orientation (flash-attention q @ k^T pattern) keeps the
    # XLU/VPU free so the kernel stays HBM-bound on v6e/v7x.
    z = jax.lax.dot_general(
        w_ref[...], x_ref[...],
        dimension_numbers=(((1,), (1,)), ((), ())),
        preferred_element_type=jnp.float32,
        precision=jax.lax.Precision.HIGHEST,
    )                                   # (1, tile_rows) logits, lane-dense
    z = z + b_ref[0, 0]                 # scalar bias from SMEM
    # Sigmoid stays on the EUP slot (idle in this memory-bound kernel).
    o_ref[...] = jax.nn.sigmoid(z).reshape(o_ref.shape)


def logistic_regression(x, w, b, *, per_buffer_bytes=12 << 20):
    """sigmoid(x @ w.T + b).

    x: (N, D) float32; w: (1, D) or (D,) float32 (PyTorch Linear layout);
    b: scalar / (1,) float32.  Returns (N, 1) float32.
    """
    x = jnp.asarray(x, jnp.float32)
    N, D = x.shape
    w = jnp.asarray(w, jnp.float32).reshape(1, D)
    b = jnp.asarray(b, jnp.float32).reshape(1, 1)

    # Tiny batches: pad to one full 128-row slab (negligible copy).  Large
    # batches are never padded -- the partial final block is handled by Pallas.
    n_rows = N
    if n_rows < _LANE:
        x = jnp.pad(x, ((0, _LANE - n_rows), (0, 0)))
        n_rows = _LANE

    # ---- tile sizing: byte-based, lane-padding aware -------------------------
    d_pad = _round_up(D, _LANE)                  # VMEM lane-padded feature width
    row_bytes = d_pad * 4                        # f32
    rows_128 = _round_up(n_rows, _LANE)

    # Rows per x buffer targeting ~per_buffer_bytes (pipeline double-buffers it).
    vmem_rows = max(_LANE, (per_buffer_bytes // row_bytes) // _LANE * _LANE)
    # Cap the tile so large batches give >= ~8 grid steps (pipelining + both
    # v7x TensorCores), but never below 1024 rows of useful work per step.
    split_rows = max(1024, _round_up(-(-rows_128 // 8), _LANE))
    tile_rows = max(_LANE, min(vmem_rows, split_rows, rows_128))

    num_steps = pl.cdiv(n_rows, tile_rows)
    n_pad = num_steps * tile_rows                # rows covered by the grid (>= N)

    # ---- VMEM accounting (double-buffered x + out, resident w, headroom) -----
    x_buf = tile_rows * row_bytes
    out_buf = _SUBLANE * tile_rows * 4           # (1, tile_rows) block, sublane-padded
    w_buf = _SUBLANE * d_pad * 4
    vmem_limit = 2 * x_buf + 2 * out_buf + 2 * w_buf + (4 << 20)
    vmem_limit = int(min(max(vmem_limit, 16 << 20), 40 << 20))

    cost = pl.CostEstimate(
        flops=2 * N * D,
        transcendentals=N,
        bytes_accessed=N * D * 4 + N * 4 + D * 4 + 4,
    )

    out = pl.pallas_call(
        _logreg_kernel,
        out_shape=jax.ShapeDtypeStruct((num_steps, 1, tile_rows), jnp.float32),
        grid_spec=pltpu.PrefetchScalarGridSpec(
            num_scalar_prefetch=0,
            grid=(num_steps,),
            in_specs=[
                # x: batch-tiled -> double-buffered HBM->VMEM pipeline; the
                # final block may be partial (extra rows are discarded below).
                pl.BlockSpec((tile_rows, D), lambda i: (i, 0)),
                # w: same block every step -> stays resident in VMEM.
                pl.BlockSpec((1, D), lambda i: (0, 0)),
                # b: scalar bias in SMEM.
                pl.BlockSpec(memory_space=pltpu.MemorySpace.SMEM),
            ],
            out_specs=pl.BlockSpec((1, 1, tile_rows), lambda i: (i, 0, 0)),
        ),
        compiler_params=pltpu.CompilerParams(
            dimension_semantics=("parallel",),   # shard batch over v7x's 2 TCs
            vmem_limit_bytes=vmem_limit,
        ),
        cost_estimate=cost,
    )(x, w, b)

    # (num_steps, 1, tile_rows) lane-dense slabs -> (N, 1) column (drop padding).
    return out.reshape(n_pad, 1)[:N]


if __name__ == "__main__":
    # Shapes consistent with the module: small batch, n_input_features = 32.
    N, D = 8, 32
    key = jax.random.PRNGKey(0)
    kx, kw, kb = jax.random.split(key, 3)

    x = jax.random.normal(kx, (N, D), dtype=jnp.float32)
    # nn.Linear-style init: U(-1/sqrt(D), 1/sqrt(D)).
    bound = 1.0 / float(np.sqrt(D))
    w = jax.random.uniform(kw, (1, D), minval=-bound, maxval=bound, dtype=jnp.float32)
    b = jax.random.uniform(kb, (1,), minval=-bound, maxval=bound, dtype=jnp.float32)

    def ref(xa, wa, ba):
        z = np.asarray(xa, np.float64) @ np.asarray(wa, np.float64).T
        z = z + np.float64(np.asarray(ba).reshape(-1)[0])
        return 1.0 / (1.0 + np.exp(-z))

    y = logistic_regression(x, w, b)
    jax.block_until_ready(y)
    assert y.shape == (N, 1)
    assert np.allclose(np.asarray(y), ref(x, w, b), atol=1e-4, rtol=1e-4), \
        "mismatch vs. reference (small batch)"

    # Second check: ragged multi-step grid (pipelined path + partial final block).
    N2 = 2500
    x2 = jax.random.normal(jax.random.PRNGKey(1), (N2, D), dtype=jnp.float32)
    y2 = logistic_regression(x2, w, b)
    jax.block_until_ready(y2)
    assert y2.shape == (N2, 1)
    assert np.allclose(np.asarray(y2), ref(x2, w, b), atol=1e-4, rtol=1e-4), \
        "mismatch vs. reference (multi-step batch)"

    print("KERNEL_OK")
</pallas_src>

<mosaic_0001>
module attributes {stable_mosaic.version = 11 : i64} {
  func.func @_logreg_kernel(%arg0: i32, %arg1: memref<128x32xf32, #tpu.memory_space<vmem>>, %arg2: memref<1x32xf32, #tpu.memory_space<vmem>>, %arg3: memref<1x1xf32, #tpu.memory_space<smem>>, %arg4: memref<1x1x128xf32, #tpu.memory_space<vmem>>) attributes {dimension_semantics = [#tpu.dimension_semantics<parallel>], iteration_bounds = array<i64: 1>, scalar_prefetch = 0 : i64, scratch_operands = 0 : i64, tpu.core_type = #tpu.core_type<tc>, window_params = [{transform_indices = @transform_0, window_bounds = array<i64: 128, 32>}, {pipeline_mode = #tpu.pipeline_mode<synchronous>, transform_indices = @transform_1, window_bounds = array<i64: 1, 32>}, {transform_indices = @transform_2, window_bounds = array<i64: 1, 1>}, {transform_indices = @transform_3, window_bounds = array<i64: 1, 1, 128>}]} {
    %c0 = arith.constant 0 : index
    %c0_0 = arith.constant 0 : index
    %0 = vector.load %arg2[%c0, %c0_0] : memref<1x32xf32, #tpu.memory_space<vmem>>, vector<1x32xf32>
    %c0_1 = arith.constant 0 : index
    %c0_2 = arith.constant 0 : index
    %1 = vector.load %arg1[%c0_1, %c0_2] : memref<128x32xf32, #tpu.memory_space<vmem>>, vector<128x32xf32>
    %cst = arith.constant dense<0.000000e+00> : vector<1x128xf32>
    %2 = tpu.matmul %0, %1, %cst {dimension_numbers = #tpu.dot_dimension_numbers<[1], [1], [0], [0], [0, 0, 1, 0], [], []>, precision = #tpu.contract_precision<fp32>} : vector<1x32xf32>, vector<128x32xf32>, vector<1x128xf32> -> vector<1x128xf32>
    %c0_3 = arith.constant 0 : index
    %c0_4 = arith.constant 0 : index
    %3 = memref.load %arg3[%c0_3, %c0_4] : memref<1x1xf32, #tpu.memory_space<smem>>
    %4 = vector.broadcast %3 : f32 to vector<1x128xf32>
    %5 = arith.addf %2, %4 : vector<1x128xf32>
    %6 = arith.negf %5 : vector<1x128xf32>
    %7 = math.exp %6 : vector<1x128xf32>
    %cst_5 = arith.constant 1.000000e+00 : f32
    %8 = vector.broadcast %cst_5 : f32 to vector<1x128xf32>
    %9 = arith.addf %8, %7 : vector<1x128xf32>
    %10 = arith.divf %8, %9 : vector<1x128xf32>
    %11 = vector.shape_cast %10 : vector<1x128xf32> to vector<1x1x128xf32>
    %c0_6 = arith.constant 0 : index
    %c0_7 = arith.constant 0 : index
    %c0_8 = arith.constant 0 : index
    %12 = vector.load %arg4[%c0_6, %c0_7, %c0_8] : memref<1x1x128xf32, #tpu.memory_space<vmem>>, vector<1x1x128xf32>
    tpu.vector_store %arg4[%c0_6, %c0_7, %c0_8], %11 {strides = array<i32>} : memref<1x1x128xf32, #tpu.memory_space<vmem>>, vector<1x1x128xf32>,
    return
  }
  func.func @transform_0(%arg0: i32) -> (i32, i32) {
    %c0_i32 = arith.constant 0 : i32
    %c0_i32_0 = arith.constant 0 : i32
    return %arg0, %c0_i32 : i32, i32
  }
  func.func @transform_1(%arg0: i32) -> (i32, i32) {
    %c0_i32 = arith.constant 0 : i32
    %c0_i32_0 = arith.constant 0 : i32
    %c0_i32_1 = arith.constant 0 : i32
    return %c0_i32, %c0_i32_0 : i32, i32
  }
  func.func @transform_2(%arg0: i32) -> (i32, i32) {
    %c0_i32 = arith.constant 0 : i32
    %c0_i32_0 = arith.constant 0 : i32
    %c0_i32_1 = arith.constant 0 : i32
    return %c0_i32, %c0_i32_0 : i32, i32
  }
  func.func @transform_3(%arg0: i32) -> (i32, i32, i32) {
    %c0_i32 = arith.constant 0 : i32
    %c0_i32_0 = arith.constant 0 : i32
    %c0_i32_1 = arith.constant 0 : i32
    return %arg0, %c0_i32, %c0_i32_0 : i32, i32, i32
  }
}

</mosaic_0001>

<llo_original>
// kernel: tpu_custom_call.1
$region0: #{tpu_custom_call.1}
  #allocation0 [shape = 'u32[]', space=smem, size = 0x4, offset = 0x4, fixed_abs, tag = 'smem constant byte address 0x4 - core index']
  #allocation1 [shape = 'u32[72,128]{1,0:T(1,128)}', space=vmem, size = 0x9000, scoped, tag = 'internal scratch']
  #allocation2 [shape = 'f32[1,1]{1,0:T(1,128)S(6)}', space=smem, size = 0x200, scoped, tag = 'scoped memory for tpu_custom_call.1']
  %s0 = inlined_call_operand.vmem [shape: f32[128,32], index: 0, kind: input, shape index: {}]
  %s1 = inlined_call_operand.vmem [shape: f32[1,32], index: 1, kind: input, shape index: {}]
  %s2 = inlined_call_operand.<no memory space> [shape: f32[1,1], index: 2, kind: input, shape index: {}]
  %s3 = inlined_call_operand.hbm [shape: f32[1,1,128], index: 3, kind: output, shape index: {}]
  %s4 = sld [smem:[#allocation0]]
  $region22: #{tpu_custom_call.1} parent=0
    _
  %s6 = ssub.s32 1, %s4
  %s7 = scalar_select 0, %s6, %s4
  %8 = sst [smem:[#allocation2]] %s2
  $region1: #{tpu_custom_call.1} parent=0
    #allocation3 [shape = 'u8[512]{0}', space=vmem, size = 0x400, scoped, tag = 'output window, operand 0, single buffered']
    #allocation4 [shape = 's32[1]{0}', space=sflag, size = 0x4, scoped, tag = 'scoped memory for tpu_custom_call.1']
    %9 = vsyncpa [#allocation4], 0
    // Predicated region
    $region2: #{tpu_custom_call.1} parent=1 // pred_check
      _
    $region3: #{tpu_custom_call.1} parent=1 // pred_check_branch
      %11 = sbr.rel (0) target = $region5
    $region4: #{tpu_custom_call.1} parent=1 // pred_region
      _
    $region5: #{tpu_custom_call.1} parent=1 // pred_fallthru
      _
    // Predicated region
    $region6: #{tpu_custom_call.1} parent=1 // pred_check
      _
    $region7: #{tpu_custom_call.1} parent=1 // pred_check_branch
      %13 = sbr.rel (0) target = $region9
    $region8: #{tpu_custom_call.1} parent=1 // pred_region
      _
    $region9: #{tpu_custom_call.1} parent=1 // pred_fallthru
      _
    // Predicated region
    $region10: #{tpu_custom_call.1} parent=1 // pred_check
      _
    $region11: #{tpu_custom_call.1} parent=1 // pred_check_branch
      %15 = sbr.rel (0) target = $region13
    $region12: #{tpu_custom_call.1} parent=1 // pred_region
      _
    $region13: #{tpu_custom_call.1} parent=1 // pred_fallthru
      _
    %v16 = vld [vmem:[%s1] sm:$0x1]
    %v17 = vld [vmem:[%s0] sm:$0xff]
    %v18 = vld [vmem:[%s0 + $0x8] sm:$0xff]
    %v19 = vld [vmem:[%s0 + $0x10] sm:$0xff]
    %v20 = vld [vmem:[%s0 + $0x18] sm:$0xff]
    %v21 = vld [vmem:[%s0 + $0x20] sm:$0xff]
    %v22 = vld [vmem:[%s0 + $0x28] sm:$0xff]
    %v23 = vld [vmem:[%s0 + $0x30] sm:$0xff]
    %v24 = vld [vmem:[%s0 + $0x38] sm:$0xff]
    %v25 = vld [vmem:[%s0 + $0x40] sm:$0xff]
    %v26 = vld [vmem:[%s0 + $0x48] sm:$0xff]
    %v27 = vld [vmem:[%s0 + $0x50] sm:$0xff]
    %v28 = vld [vmem:[%s0 + $0x58] sm:$0xff]
    %v29 = vld [vmem:[%s0 + $0x60] sm:$0xff]
    %v30 = vld [vmem:[%s0 + $0x68] sm:$0xff]
    %v31 = vld [vmem:[%s0 + $0x70] sm:$0xff]
    %v32 = vld [vmem:[%s0 + $0x78] sm:$0xff]
    %s33 = sld [smem:[#allocation2]]
    %v34 = vstv %s33
    %vm35 = vcmask 261120
    %v37 = vsel %vm35, %v16, 0
    %v40 = vsel %vm35, %v17, 0
    %v43 = vsel %vm35, %v18, 0
    %v46 = vsel %vm35, %v19, 0
    %v49 = vsel %vm35, %v20, 0
    %v52 = vsel %vm35, %v21, 0
    %v55 = vsel %vm35, %v22, 0
    %v58 = vsel %vm35, %v23, 0
    %v61 = vsel %vm35, %v24, 0
    %v64 = vsel %vm35, %v25, 0
    %v67 = vsel %vm35, %v26, 0
    %v70 = vsel %vm35, %v27, 0
    %v73 = vsel %vm35, %v28, 0
    %v76 = vsel %vm35, %v29, 0
    %v79 = vsel %vm35, %v30, 0
    %v82 = vsel %vm35, %v31, 0
    %v85 = vsel %vm35, %v32, 0
    %v87 = vand.u32 %v85, 4294901760
    %88 = vmatpush.xpose.msra.mxu0 %v87
    %v89 = vand.u32 %v82, 4294901760
    %90 = vmatpush.xpose.msra.mxu0 %v89
    %v91 = vand.u32 %v79, 4294901760
    %92 = vmatpush.xpose.msra.mxu0 %v91
    %v93 = vand.u32 %v76, 4294901760
    %94 = vmatpush.xpose.msra.mxu0 %v93
    %v95 = vand.u32 %v73, 4294901760
    %96 = vmatpush.xpose.msra.mxu0 %v95
    %v97 = vand.u32 %v70, 4294901760
    %98 = vmatpush.xpose.msra.mxu0 %v97
    %v99 = vand.u32 %v67, 4294901760
    %100 = vmatpush.xpose.msra.mxu0 %v99
    %v101 = vand.u32 %v64, 4294901760
    %102 = vmatpush.xpose.msra.mxu0 %v101
    %v103 = vand.u32 %v61, 4294901760
    %104 = vmatpush.xpose.msra.mxu0 %v103
    %v105 = vand.u32 %v58, 4294901760
    %106 = vmatpush.xpose.msra.mxu0 %v105
    %v107 = vand.u32 %v55, 4294901760
    %108 = vmatpush.xpose.msra.mxu0 %v107
    %v109 = vand.u32 %v52, 4294901760
    %110 = vmatpush.xpose.msra.mxu0 %v109
    %v111 = vand.u32 %v49, 4294901760
    %112 = vmatpush.xpose.msra.mxu0 %v111
    %v113 = vand.u32 %v46, 4294901760
    %114 = vmatpush.xpose.msra.mxu0 %v113
    %v115 = vand.u32 %v43, 4294901760
    %116 = vmatpush.xpose.msra.mxu0 %v115
    %v117 = vand.u32 %v40, 4294901760
    %118 = vmatpush.xpose.msra.mxu0 %v117
    %v119 = vand.u32 %v37, 4294901760
    %v120 = vsub.f32 %v37, %v119
    %v121 = vand.u32 %v120, 4294901760
    %v122 = vsub.f32 %v120, %v121
    %v123 = vand.u32 %v122, 4294901760
    %124 = vmatmul.f32.gmra.mxu0 %v123
    %v125 = vpop.f32.mrf.mxu0
    %v126 = vadd.f32 %v34, %v125
    %127 = vdwg.mxu0
    %v128 = vand.u32 %v85, 4294901760
    %v129 = vsub.f32 %v85, %v128
    %v130 = vand.u32 %v129, 4294901760
    %v131 = vsub.f32 %v129, %v130
    %v132 = vand.u32 %v131, 4294901760
    %133 = vmatpush.xpose.msra.mxu0 %v132
    %v134 = vand.u32 %v82, 4294901760
    %v135 = vsub.f32 %v82, %v134
    %v136 = vand.u32 %v135, 4294901760
    %v137 = vsub.f32 %v135, %v136
    %v138 = vand.u32 %v137, 4294901760
    %139 = vmatpush.xpose.msra.mxu0 %v138
    %v140 = vand.u32 %v79, 4294901760
    %v141 = vsub.f32 %v79, %v140
    %v142 = vand.u32 %v141, 4294901760
    %v143 = vsub.f32 %v141, %v142
    %v144 = vand.u32 %v143, 4294901760
    %145 = vmatpush.xpose.msra.mxu0 %v144
    %v146 = vand.u32 %v76, 4294901760
    %v147 = vsub.f32 %v76, %v146
    %v148 = vand.u32 %v147, 4294901760
    %v149 = vsub.f32 %v147, %v148
    %v150 = vand.u32 %v149, 4294901760
    %151 = vmatpush.xpose.msra.mxu0 %v150
    %v152 = vand.u32 %v73, 4294901760
    %v153 = vsub.f32 %v73, %v152
    %v154 = vand.u32 %v153, 4294901760
    %v155 = vsub.f32 %v153, %v154
    %v156 = vand.u32 %v155, 4294901760
    %157 = vmatpush.xpose.msra.mxu0 %v156
    %v158 = vand.u32 %v70, 4294901760
    %v159 = vsub.f32 %v70, %v158
    %v160 = vand.u32 %v159, 4294901760
    %v161 = vsub.f32 %v159, %v160
    %v162 = vand.u32 %v161, 4294901760
    %163 = vmatpush.xpose.msra.mxu0 %v162
    %v164 = vand.u32 %v67, 4294901760
    %v165 = vsub.f32 %v67, %v164
    %v166 = vand.u32 %v165, 4294901760
    %v167 = vsub.f32 %v165, %v166
    %v168 = vand.u32 %v167, 4294901760
    %169 = vmatpush.xpose.msra.mxu0 %v168
    %v170 = vand.u32 %v64, 4294901760
    %v171 = vsub.f32 %v64, %v170
    %v172 = vand.u32 %v171, 4294901760
    %v173 = vsub.f32 %v171, %v172
    %v174 = vand.u32 %v173, 4294901760
    %175 = vmatpush.xpose.msra.mxu0 %v174
    %v176 = vand.u32 %v61, 4294901760
    %v177 = vsub.f32 %v61, %v176
    %v178 = vand.u32 %v177, 4294901760
    %v179 = vsub.f32 %v177, %v178
    %v180 = vand.u32 %v179, 4294901760
    %181 = vmatpush.xpose.msra.mxu0 %v180
    %v182 = vand.u32 %v58, 4294901760
    %v183 = vsub.f32 %v58, %v182
    %v184 = vand.u32 %v183, 4294901760
    %v185 = vsub.f32 %v183, %v184
    %v186 = vand.u32 %v185, 4294901760
    %187 = vmatpush.xpose.msra.mxu0 %v186
    %v188 = vand.u32 %v55, 4294901760
    %v189 = vsub.f32 %v55, %v188
    %v190 = vand.u32 %v189, 4294901760
    %v191 = vsub.f32 %v189, %v190
    %v192 = vand.u32 %v191, 4294901760
    %193 = vmatpush.xpose.msra.mxu0 %v192
    %v194 = vand.u32 %v52, 4294901760
    %v195 = vsub.f32 %v52, %v194
    %v196 = vand.u32 %v195, 4294901760
    %v197 = vsub.f32 %v195, %v196
    %v198 = vand.u32 %v197, 4294901760
    %199 = vmatpush.xpose.msra.mxu0 %v198
    %v200 = vand.u32 %v49, 4294901760
    %v201 = vsub.f32 %v49, %v200
    %v202 = vand.u32 %v201, 4294901760
    %v203 = vsub.f32 %v201, %v202
    %v204 = vand.u32 %v203, 4294901760
    %205 = vmatpush.xpose.msra.mxu0 %v204
    %v206 = vand.u32 %v46, 4294901760
    %v207 = vsub.f32 %v46, %v206
    %v208 = vand.u32 %v207, 4294901760
    %v209 = vsub.f32 %v207, %v208
    %v210 = vand.u32 %v209, 4294901760
    %211 = vmatpush.xpose.msra.mxu0 %v210
    %v212 = vand.u32 %v43, 4294901760
    %v213 = vsub.f32 %v43, %v212
    %v214 = vand.u32 %v213, 4294901760
    %v215 = vsub.f32 %v213, %v214
    %v216 = vand.u32 %v215, 4294901760
    %217 = vmatpush.xpose.msra.mxu0 %v216
    %v218 = vand.u32 %v40, 4294901760
    %v219 = vsub.f32 %v40, %v218
    %v220 = vand.u32 %v219, 4294901760
    %v221 = vsub.f32 %v219, %v220
    %v222 = vand.u32 %v221, 4294901760
    %223 = vmatpush.xpose.msra.mxu0 %v222
    %v224 = vand.u32 %v37, 4294901760
    %225 = vmatmul.f32.gmra.mxu0 %v224
    %v226 = vpop.f32.mrf.mxu0
    %v227 = vadd.f32 %v126, %v226
    %228 = vdwg.mxu0
    %v229 = vand.u32 %v85, 4294901760
    %v230 = vsub.f32 %v85, %v229
    %231 = vmatpush.xpose.msra.mxu0 %v230
    %v232 = vand.u32 %v82, 4294901760
    %v233 = vsub.f32 %v82, %v232
    %234 = vmatpush.xpose.msra.mxu0 %v233
    %v235 = vand.u32 %v79, 4294901760
    %v236 = vsub.f32 %v79, %v235
    %237 = vmatpush.xpose.msra.mxu0 %v236
    %v238 = vand.u32 %v76, 4294901760
    %v239 = vsub.f32 %v76, %v238
    %240 = vmatpush.xpose.msra.mxu0 %v239
    %v241 = vand.u32 %v73, 4294901760
    %v242 = vsub.f32 %v73, %v241
    %243 = vmatpush.xpose.msra.mxu0 %v242
    %v244 = vand.u32 %v70, 4294901760
    %v245 = vsub.f32 %v70, %v244
    %246 = vmatpush.xpose.msra.mxu0 %v245
    %v247 = vand.u32 %v67, 4294901760
    %v248 = vsub.f32 %v67, %v247
    %249 = vmatpush.xpose.msra.mxu0 %v248
    %v250 = vand.u32 %v64, 4294901760
    %v251 = vsub.f32 %v64, %v250
    %252 = vmatpush.xpose.msra.mxu0 %v251
    %v253 = vand.u32 %v61, 4294901760
    %v254 = vsub.f32 %v61, %v253
    %255 = vmatpush.xpose.msra.mxu0 %v254
    %v256 = vand.u32 %v58, 4294901760
    %v257 = vsub.f32 %v58, %v256
    %258 = vmatpush.xpose.msra.mxu0 %v257
    %v259 = vand.u32 %v55, 4294901760
    %v260 = vsub.f32 %v55, %v259
    %261 = vmatpush.xpose.msra.mxu0 %v260
    %v262 = vand.u32 %v52, 4294901760
    %v263 = vsub.f32 %v52, %v262
    %264 = vmatpush.xpose.msra.mxu0 %v263
    %v265 = vand.u32 %v49, 4294901760
    %v266 = vsub.f32 %v49, %v265
    %267 = vmatpush.xpose.msra.mxu0 %v266
    %v268 = vand.u32 %v46, 4294901760
    %v269 = vsub.f32 %v46, %v268
    %270 = vmatpush.xpose.msra.mxu0 %v269
    %v271 = vand.u32 %v43, 4294901760
    %v272 = vsub.f32 %v43, %v271
    %273 = vmatpush.xpose.msra.mxu0 %v272
    %v274 = vand.u32 %v40, 4294901760
    %v275 = vsub.f32 %v40, %v274
    %276 = vmatpush.xpose.msra.mxu0 %v275
    %v277 = vand.u32 %v37, 4294901760
    %v278 = vsub.f32 %v37, %v277
    %279 = vmatmul.f32.gmra.mxu0 %v278
    %v280 = vpop.f32.mrf.mxu0
    %v281 = vadd.f32 %v227, %v280
    %282 = vdwg.mxu0
    %v283 = vand.u32 %v85, 4294901760
    %284 = vmatpush.xpose.msra.mxu0 %v283
    %v285 = vand.u32 %v82, 4294901760
    %286 = vmatpush.xpose.msra.mxu0 %v285
    %v287 = vand.u32 %v79, 4294901760
    %288 = vmatpush.xpose.msra.mxu0 %v287
    %v289 = vand.u32 %v76, 4294901760
    %290 = vmatpush.xpose.msra.mxu0 %v289
    %v291 = vand.u32 %v73, 4294901760
    %292 = vmatpush.xpose.msra.mxu0 %v291
    %v293 = vand.u32 %v70, 4294901760
    %294 = vmatpush.xpose.msra.mxu0 %v293
    %v295 = vand.u32 %v67, 4294901760
    %296 = vmatpush.xpose.msra.mxu0 %v295
    %v297 = vand.u32 %v64, 4294901760
    %298 = vmatpush.xpose.msra.mxu0 %v297
    %v299 = vand.u32 %v61, 4294901760
    %300 = vmatpush.xpose.msra.mxu0 %v299
    %v301 = vand.u32 %v58, 4294901760
    %302 = vmatpush.xpose.msra.mxu0 %v301
    %v303 = vand.u32 %v55, 4294901760
    %304 = vmatpush.xpose.msra.mxu0 %v303
    %v305 = vand.u32 %v52, 4294901760
    %306 = vmatpush.xpose.msra.mxu0 %v305
    %v307 = vand.u32 %v49, 4294901760
    %308 = vmatpush.xpose.msra.mxu0 %v307
    %v309 = vand.u32 %v46, 4294901760
    %310 = vmatpush.xpose.msra.mxu0 %v309
    %v311 = vand.u32 %v43, 4294901760
    %312 = vmatpush.xpose.msra.mxu0 %v311
    %v313 = vand.u32 %v40, 4294901760
    %314 = vmatpush.xpose.msra.mxu0 %v313
    %v315 = vand.u32 %v37, 4294901760
    %v316 = vsub.f32 %v37, %v315
    %v317 = vand.u32 %v316, 4294901760
    %318 = vmatmul.f32.gmra.mxu0 %v317
    %v319 = vpop.f32.mrf.mxu0
    %v320 = vadd.f32 %v281, %v319
    %321 = vdwg.mxu0
    %v322 = vand.u32 %v85, 4294901760
    %v323 = vsub.f32 %v85, %v322
    %v324 = vand.u32 %v323, 4294901760
    %325 = vmatpush.xpose.msra.mxu0 %v324
    %v326 = vand.u32 %v82, 4294901760
    %v327 = vsub.f32 %v82, %v326
    %v328 = vand.u32 %v327, 4294901760
    %329 = vmatpush.xpose.msra.mxu0 %v328
    %v330 = vand.u32 %v79, 4294901760
    %v331 = vsub.f32 %v79, %v330
    %v332 = vand.u32 %v331, 4294901760
    %333 = vmatpush.xpose.msra.mxu0 %v332
    %v334 = vand.u32 %v76, 4294901760
    %v335 = vsub.f32 %v76, %v334
    %v336 = vand.u32 %v335, 4294901760
    %337 = vmatpush.xpose.msra.mxu0 %v336
    %v338 = vand.u32 %v73, 4294901760
    %v339 = vsub.f32 %v73, %v338
    %v340 = vand.u32 %v339, 4294901760
    %341 = vmatpush.xpose.msra.mxu0 %v340
    %v342 = vand.u32 %v70, 4294901760
    %v343 = vsub.f32 %v70, %v342
    %v344 = vand.u32 %v343, 4294901760
    %345 = vmatpush.xpose.msra.mxu0 %v344
    %v346 = vand.u32 %v67, 4294901760
    %v347 = vsub.f32 %v67, %v346
    %v348 = vand.u32 %v347, 4294901760
    %349 = vmatpush.xpose.msra.mxu0 %v348
    %v350 = vand.u32 %v64, 4294901760
    %v351 = vsub.f32 %v64, %v350
    %v352 = vand.u32 %v351, 4294901760
    %353 = vmatpush.xpose.msra.mxu0 %v352
    %v354 = vand.u32 %v61, 4294901760
    %v355 = vsub.f32 %v61, %v354
    %v356 = vand.u32 %v355, 4294901760
    %357 = vmatpush.xpose.msra.mxu0 %v356
    %v358 = vand.u32 %v58, 4294901760
    %v359 = vsub.f32 %v58, %v358
    %v360 = vand.u32 %v359, 4294901760
    %361 = vmatpush.xpose.msra.mxu0 %v360
    %v362 = vand.u32 %v55, 4294901760
    %v363 = vsub.f32 %v55, %v362
    %v364 = vand.u32 %v363, 4294901760
    %365 = vmatpush.xpose.msra.mxu0 %v364
    %v366 = vand.u32 %v52, 4294901760
    %v367 = vsub.f32 %v52, %v366
    %v368 = vand.u32 %v367, 4294901760
    %369 = vmatpush.xpose.msra.mxu0 %v368
    %v370 = vand.u32 %v49, 4294901760
    %v371 = vsub.f32 %v49, %v370
    %v372 = vand.u32 %v371, 4294901760
    %373 = vmatpush.xpose.msra.mxu0 %v372
    %v374 = vand.u32 %v46, 4294901760
    %v375 = vsub.f32 %v46, %v374
    %v376 = vand.u32 %v375, 4294901760
    %377 = vmatpush.xpose.msra.mxu0 %v376
    %v378 = vand.u32 %v43, 4294901760
    %v379 = vsub.f32 %v43, %v378
    %v380 = vand.u32 %v379, 4294901760
    %381 = vmatpush.xpose.msra.mxu0 %v380
    %v382 = vand.u32 %v40, 4294901760
    %v383 = vsub.f32 %v40, %v382
    %v384 = vand.u32 %v383, 4294901760
    %385 = vmatpush.xpose.msra.mxu0 %v384
    %v386 = vand.u32 %v37, 4294901760
    %387 = vmatmul.f32.gmra.mxu0 %v386
    %v388 = vpop.f32.mrf.mxu0
    %v389 = vadd.f32 %v320, %v388
    %390 = vdwg.mxu0
    %v391 = vand.u32 %v85, 4294901760
    %392 = vmatpush.xpose.msra.mxu0 %v391
    %v393 = vand.u32 %v82, 4294901760
    %394 = vmatpush.xpose.msra.mxu0 %v393
    %v395 = vand.u32 %v79, 4294901760
    %396 = vmatpush.xpose.msra.mxu0 %v395
    %v397 = vand.u32 %v76, 4294901760
    %398 = vmatpush.xpose.msra.mxu0 %v397
    %v399 = vand.u32 %v73, 4294901760
    %400 = vmatpush.xpose.msra.mxu0 %v399
    %v401 = vand.u32 %v70, 4294901760
    %402 = vmatpush.xpose.msra.mxu0 %v401
    %v403 = vand.u32 %v67, 4294901760
    %404 = vmatpush.xpose.msra.mxu0 %v403
    %v405 = vand.u32 %v64, 4294901760
    %406 = vmatpush.xpose.msra.mxu0 %v405
    %v407 = vand.u32 %v61, 4294901760
    %408 = vmatpush.xpose.msra.mxu0 %v407
    %v409 = vand.u32 %v58, 4294901760
    %410 = vmatpush.xpose.msra.mxu0 %v409
    %v411 = vand.u32 %v55, 4294901760
    %412 = vmatpush.xpose.msra.mxu0 %v411
    %v413 = vand.u32 %v52, 4294901760
    %414 = vmatpush.xpose.msra.mxu0 %v413
    %v415 = vand.u32 %v49, 4294901760
    %416 = vmatpush.xpose.msra.mxu0 %v415
    %v417 = vand.u32 %v46, 4294901760
    %418 = vmatpush.xpose.msra.mxu0 %v417
    %v419 = vand.u32 %v43, 4294901760
    %420 = vmatpush.xpose.msra.mxu0 %v419
    %v421 = vand.u32 %v40, 4294901760
    %422 = vmatpush.xpose.msra.mxu0 %v421
    %v423 = vand.u32 %v37, 4294901760
    %424 = vmatmul.f32.gmra.mxu0 %v423
    %v425 = vpop.f32.mrf.mxu0
    %v426 = vadd.f32 %v389, %v425
    %427 = vdwg.mxu0
    %v428 = vxor.u32 %v426, 2147483648
    %v429 = vmul.f32 %v428, 1.442695
    %v430 = vpow.pop %v429
    %v431 = vadd.f32 %v430, 1.0
    %v432 = vrcp.pop %v431
    %v433 = vmul.f32 %v431, %v432
    %v434 = vsub.f32 1.0, %v433
    %v435 = vmul.f32 %v432, %v434
    %v436 = vadd.f32 %v432, %v435
    %vm437 = vweird.f32 %v431
    %vm438 = vweird.f32 %v432
    %vm439 = vmor %vm437, %vm438
    %v440 = vsel %vm439, %v432, %v436
    %v441 = vand.u32 2147483647, %v431
    %vm442 = vcmp.eq.f32.partialorder %v441, 8.507059e+37
    %v443 = vand.u32 %v431, 2147483648
    %v444 = vor.u32 1.1754944e-38, %v443
    %v445 = vsel %vm442, %v444, %v440
    %v446 = vmul.f32 1.0, %v445
    %447 = vst [vmem:[#allocation3] sm:$0x1] %v446
    // Predicated region
    $region14: #{tpu_custom_call.1} parent=1 // pred_check
      _
    $region15: #{tpu_custom_call.1} parent=1 // pred_check_branch
      %449 = sbr.rel (0) target = $region17
    $region16: #{tpu_custom_call.1} parent=1 // pred_region
      %451 = vsyncadd [#allocation4], 0
      %s453 = sshll.u32 [#allocation3], 4
      %s454 = int_to_ptr.vmem [resolvable:$true] %s453
      %s455 = sshll.u32 %s3, 4
      %s456 = int_to_ptr.hbm [resolvable:$true] %s455
      %458 = dma.vmem_to_hbm [thread:$0]  %s454, 16, %s456, [#allocation4]
    $region17: #{tpu_custom_call.1} parent=1 // pred_fallthru
      _
    // Predicated region
    $region18: #{tpu_custom_call.1} parent=1 // pred_check
      _
    $region19: #{tpu_custom_call.1} parent=1 // pred_check_branch
      %460 = sbr.rel (0) target = $region21
    $region20: #{tpu_custom_call.1} parent=1 // pred_region
      %462 = dma.done [#allocation4], 16
    $region21: #{tpu_custom_call.1} parent=1 // pred_fallthru
      _
    %463 = vsyncpa [#allocation4], 1

</llo_original>
